<compile_context>
chip_gen: v7x
topology: tpu7x:2x2x1
jax: 0.10.0
libtpu: 0.0.40
codegen_flags: <defaults>
</compile_context>

<pallas_src>
import functools
import math

import jax
import jax.numpy as jnp
from jax.experimental import pallas as pl
from jax.experimental.pallas import tpu as pltpu


def _notears_sobolev_kernel(xt_ref, w_ref, inv_mu_ref, yt_ref, l2_ref, *, k):
    """xt_ref:     (d, tile_n)   transposed input tile (n on lanes)
       w_ref:      (d, k*d)      mu-scaled fused weights, resident
       inv_mu_ref: (k*d, 1)      1/mu per psi row, resident
       yt_ref:     (d, tile_n)   transposed output tile
       l2_ref:     (1, tile_n)   per-lane partial sums of y**2
    """
    xt = xt_ref[...]                                     # (d, tn) f32
    # Stack the d-row block k times along sublanes -> (k*d, tn);
    # row kk*d + j holds x[:, j] across the n lanes.
    xb = jnp.concatenate([xt] * k, axis=0)
    # psi = sin(x / mu): a single dense EUP sin over the whole tile.
    # (mu itself is already folded into w_ref by the wrapper.)
    psi = jnp.sin(xb * inv_mu_ref[...])
    # y^T = W_scaled @ psi^T : (d, k*d) @ (k*d, tn) -> (d, tn), n on the free dim.
    yt = jnp.dot(w_ref[...], psi, preferred_element_type=jnp.float32)
    yt_ref[...] = yt.astype(yt_ref.dtype)
    # Per-lane partial sums of y**2 (reduce only over the d sublanes here;
    # the cross-lane/cross-tile reduction is one tiny op in the wrapper).
    l2_ref[...] = jnp.sum(yt * yt, axis=0, keepdims=True)


def notears_sobolev_forward(x, w_pos, w_neg, *, tile_n=1024):
    """x: (n, d) f32; w_pos/w_neg: (d, d*k) f32 (PyTorch nn.Linear layout).

    Returns (y, l2_reg) with y = sobolev_basis(x) @ (w_pos - w_neg).T and
    l2_reg = sum(y**2) / n  (the module's self.l2_reg_store).
    """
    n, d = x.shape
    dk = w_pos.shape[1]
    assert w_pos.shape == (d, dk) and w_neg.shape == (d, dk) and dk % d == 0
    k = dk // d

    # ---- weight prep (one-time XLA ops, fused) -----------------------------
    # PyTorch layout: W[o, j*k + kk]   (o = out var, j = in var, kk = basis)
    # Kernel layout : w_scaled[o, kk*d + j] = mu_kk * W[o, j*k + kk]
    mu = 2.0 / (2.0 * jnp.arange(k, dtype=jnp.float32) + 1.0) / math.pi   # (k,)
    w = (w_pos - w_neg).astype(jnp.float32).reshape(d, d, k)              # [o, j, kk]
    w_scaled = jnp.transpose(w * mu[None, None, :], (0, 2, 1)).reshape(d, k * d)
    inv_mu_col = jnp.repeat(1.0 / mu, d).reshape(k * d, 1)                # (k*d, 1)

    # ---- n-tiling: n on lanes, tiles a multiple of 128 ----------------------
    LANE = 128
    n_pad = ((n + LANE - 1) // LANE) * LANE
    if n_pad <= tile_n:
        tile_n = n_pad
    else:
        tile_n = max(LANE, (tile_n // LANE) * LANE)
        n_pad = ((n + tile_n - 1) // tile_n) * tile_n
    num_tiles = n_pad // tile_n

    xt = jnp.transpose(x.astype(jnp.float32))            # (d, n)
    if n_pad > n:
        # zero-padding is exact: sin(0) = 0 -> y = 0 -> contributes 0 to l2.
        xt = jnp.pad(xt, ((0, 0), (0, n_pad - n)))

    kernel = functools.partial(_notears_sobolev_kernel, k=k)

    # VMEM budget (f32): double-buffered x/y/l2 tiles + psi temporaries +
    # resident weights.  Sized with headroom; well under v7x's 64 MiB.
    vmem_bytes = 4 * (4 * d * tile_n + 2 * tile_n + 2 * k * d * tile_n
                      + k * d * (d + 1))
    vmem_limit = int(min(max(4 * vmem_bytes, 4 << 20), 64 << 20))

    cost = pl.CostEstimate(
        flops=2 * n_pad * k * d * d,
        transcendentals=n_pad * k * d,
        bytes_accessed=4 * (2 * n_pad * d + n_pad + k * d * d + k * d),
    )

    yt, l2_row = pl.pallas_call(
        kernel,
        grid=(num_tiles,),
        in_specs=[
            pl.BlockSpec((d, tile_n), lambda i: (0, i)),      # x^T tile
            pl.BlockSpec((d, k * d), lambda i: (0, 0)),       # resident weights
            pl.BlockSpec((k * d, 1), lambda i: (0, 0)),       # resident inv_mu
        ],
        out_specs=(
            pl.BlockSpec((d, tile_n), lambda i: (0, i)),      # y^T tile
            pl.BlockSpec((1, tile_n), lambda i: (0, i)),      # l2 partial row
        ),
        out_shape=(
            jax.ShapeDtypeStruct((d, n_pad), x.dtype),
            jax.ShapeDtypeStruct((1, n_pad), jnp.float32),
        ),
        compiler_params=pltpu.CompilerParams(
            dimension_semantics=("parallel",),
            vmem_limit_bytes=vmem_limit,
        ),
        cost_estimate=cost,
    )(xt, w_scaled, inv_mu_col)

    y = jnp.transpose(yt[:, :n])                          # (n, d)
    l2 = jnp.sum(l2_row[0, :n]) / n
    return y, l2


def notears_sobolev_reference(x, w_pos, w_neg):
    """Pure-JAX mirror of the PyTorch forward, for verification."""
    n, d = x.shape
    k = w_pos.shape[1] // d
    seq = []
    for kk in range(k):
        mu = 2.0 / (2 * kk + 1) / math.pi
        seq.append(mu * jnp.sin(x / mu))
    bases = jnp.stack(seq, axis=2).reshape(n, d * k)      # (n, d*k), k fastest
    y = bases @ (w_pos - w_neg).T                         # (n, d)
    l2 = jnp.sum(y ** 2) / n
    return y, l2


if __name__ == "__main__":
    D = 8    # num variables
    K = 4    # num Sobolev expansions per variable
    N = 16   # batch size

    key = jax.random.PRNGKey(0)
    kx, kp, kn = jax.random.split(key, 3)

    x = jax.random.normal(kx, (N, D), dtype=jnp.float32)
    # deterministic non-negative weights (module bounds are (0, None) off-diag)
    w_pos = 0.1 * jnp.abs(jax.random.normal(kp, (D, D * K), dtype=jnp.float32))
    w_neg = 0.1 * jnp.abs(jax.random.normal(kn, (D, D * K), dtype=jnp.float32))

    y, l2 = jax.block_until_ready(notears_sobolev_forward(x, w_pos, w_neg))
    y_ref, l2_ref = notears_sobolev_reference(x, w_pos, w_neg)

    assert y.shape == (N, D)
    assert jnp.allclose(y, y_ref, rtol=1e-4, atol=1e-5), "y mismatch"
    assert jnp.allclose(l2, l2_ref, rtol=1e-4, atol=1e-5), "l2_reg mismatch"

    print("KERNEL_OK")
</pallas_src>

<mosaic_0001>
module attributes {stable_mosaic.version = 11 : i64} {
  func.func @_notears_sobolev_kernel(%arg0: i32, %arg1: memref<8x128xf32, #tpu.memory_space<vmem>>, %arg2: memref<8x32xf32, #tpu.memory_space<vmem>>, %arg3: memref<32x1xf32, #tpu.memory_space<vmem>>, %arg4: memref<8x128xf32, #tpu.memory_space<vmem>>, %arg5: memref<1x128xf32, #tpu.memory_space<vmem>>) attributes {dimension_semantics = [#tpu.dimension_semantics<parallel>], iteration_bounds = array<i64: 1>, scalar_prefetch = 0 : i64, scratch_operands = 0 : i64, tpu.core_type = #tpu.core_type<tc>, window_params = [{transform_indices = @transform_0, window_bounds = array<i64: 8, 128>}, {pipeline_mode = #tpu.pipeline_mode<synchronous>, transform_indices = @transform_1, window_bounds = array<i64: 8, 32>}, {pipeline_mode = #tpu.pipeline_mode<synchronous>, transform_indices = @transform_2, window_bounds = array<i64: 32, 1>}, {transform_indices = @transform_3, window_bounds = array<i64: 8, 128>}, {transform_indices = @transform_4, window_bounds = array<i64: 1, 128>}]} {
    %c0 = arith.constant 0 : index
    %c0_0 = arith.constant 0 : index
    %0 = vector.load %arg1[%c0, %c0_0] : memref<8x128xf32, #tpu.memory_space<vmem>>, vector<8x128xf32>
    %1 = tpu.concatenate %0, %0, %0, %0 in 0 : vector<8x128xf32>, vector<8x128xf32>, vector<8x128xf32>, vector<8x128xf32> -> vector<32x128xf32>
    %c0_1 = arith.constant 0 : index
    %c0_2 = arith.constant 0 : index
    %2 = vector.load %arg3[%c0_1, %c0_2] : memref<32x1xf32, #tpu.memory_space<vmem>>, vector<32x1xf32>
    %3 = vector.broadcast %2 : vector<32x1xf32> to vector<32x128xf32>
    %4 = arith.mulf %1, %3 : vector<32x128xf32>
    %5 = math.sin %4 : vector<32x128xf32>
    %c0_3 = arith.constant 0 : index
    %c0_4 = arith.constant 0 : index
    %6 = vector.load %arg2[%c0_3, %c0_4] : memref<8x32xf32, #tpu.memory_space<vmem>>, vector<8x32xf32>
    %cst = arith.constant dense<0.000000e+00> : vector<8x128xf32>
    %7 = tpu.matmul %6, %5, %cst {dimension_numbers = #tpu.dot_dimension_numbers<[1], [0], [0], [1], [0, 0, 1, 1], [], []>} : vector<8x32xf32>, vector<32x128xf32>, vector<8x128xf32> -> vector<8x128xf32>
    %c0_5 = arith.constant 0 : index
    %c0_6 = arith.constant 0 : index
    %8 = vector.load %arg4[%c0_5, %c0_6] : memref<8x128xf32, #tpu.memory_space<vmem>>, vector<8x128xf32>
    tpu.vector_store %arg4[%c0_5, %c0_6], %7 {strides = array<i32>} : memref<8x128xf32, #tpu.memory_space<vmem>>, vector<8x128xf32>,
    %9 = arith.mulf %7, %7 : vector<8x128xf32>
    %cst_7 = arith.constant dense<0.000000e+00> : vector<128xf32>
    %10 = vector.multi_reduction <add>, %9, %cst_7 [0] : vector<8x128xf32> to vector<128xf32>
    %11 = vector.shape_cast %10 : vector<128xf32> to vector<1x128xf32>
    %c0_8 = arith.constant 0 : index
    %c0_9 = arith.constant 0 : index
    %12 = vector.load %arg5[%c0_8, %c0_9] : memref<1x128xf32, #tpu.memory_space<vmem>>, vector<1x128xf32>
    tpu.vector_store %arg5[%c0_8, %c0_9], %11 {strides = array<i32>} : memref<1x128xf32, #tpu.memory_space<vmem>>, vector<1x128xf32>,
    return
  }
  func.func @transform_0(%arg0: i32) -> (i32, i32) {
    %c0_i32 = arith.constant 0 : i32
    %c0_i32_0 = arith.constant 0 : i32
    return %c0_i32, %arg0 : i32, i32
  }
  func.func @transform_1(%arg0: i32) -> (i32, i32) {
    %c0_i32 = arith.constant 0 : i32
    %c0_i32_0 = arith.constant 0 : i32
    %c0_i32_1 = arith.constant 0 : i32
    return %c0_i32, %c0_i32_0 : i32, i32
  }
  func.func @transform_2(%arg0: i32) -> (i32, i32) {
    %c0_i32 = arith.constant 0 : i32
    %c0_i32_0 = arith.constant 0 : i32
    %c0_i32_1 = arith.constant 0 : i32
    return %c0_i32, %c0_i32_0 : i32, i32
  }
  func.func @transform_3(%arg0: i32) -> (i32, i32) {
    %c0_i32 = arith.constant 0 : i32
    %c0_i32_0 = arith.constant 0 : i32
    return %c0_i32, %arg0 : i32, i32
  }
  func.func @transform_4(%arg0: i32) -> (i32, i32) {
    %c0_i32 = arith.constant 0 : i32
    %c0_i32_0 = arith.constant 0 : i32
    return %c0_i32, %arg0 : i32, i32
  }
}

</mosaic_0001>

<llo_original>
// kernel: tpu_custom_call.1
$region0: #{tpu_custom_call.1}
  #allocation0 [shape = 'u32[]', space=smem, size = 0x4, offset = 0x4, fixed_abs, tag = 'smem constant byte address 0x4 - core index']
  #allocation1 [shape = 'u32[144,128]{1,0:T(1,128)}', space=vmem, size = 0x12000, scoped, tag = 'internal scratch']
  %s0 = inlined_call_operand.vmem [shape: f32[8,128], index: 0, kind: input, shape index: {}]
  %s1 = inlined_call_operand.vmem [shape: f32[8,32], index: 1, kind: input, shape index: {}]
  %s2 = inlined_call_operand.vmem [shape: f32[32,1], index: 2, kind: input, shape index: {}]
  %s3 = inlined_call_operand.hbm [shape: f32[8,128], index: 3, kind: output, shape index: {0}]
  %s4 = inlined_call_operand.hbm [shape: f32[1,128], index: 4, kind: output, shape index: {1}]
  %5 = xla_tuple %s3, %s4
  %s6 = sld [smem:[#allocation0]]
  $region30: #{tpu_custom_call.1} parent=0
    _
  %s8 = ssub.s32 1, %s6
  %s9 = scalar_select 0, %s8, %s6
  $region1: #{tpu_custom_call.1} parent=0
    #allocation2 [shape = 'u8[4096]{0}', space=vmem, size = 0x1000, scoped, tag = 'output window, operand 0, single buffered']
    #allocation3 [shape = 's32[1]{0}', space=sflag, size = 0x4, scoped, tag = 'scoped memory for tpu_custom_call.1']
    #allocation4 [shape = 'u8[512]{0}', space=vmem, size = 0x400, scoped, tag = 'output window, operand 1, single buffered']
    #allocation5 [shape = 's32[1]{0}', space=sflag, size = 0x4, scoped, tag = 'scoped memory for tpu_custom_call.1']
    %10 = vsyncpa [#allocation3], 0
    %11 = vsyncpa [#allocation5], 0
    // Predicated region
    $region2: #{tpu_custom_call.1} parent=1 // pred_check
      _
    $region3: #{tpu_custom_call.1} parent=1 // pred_check_branch
      %13 = sbr.rel (0) target = $region5
    $region4: #{tpu_custom_call.1} parent=1 // pred_region
      _
    $region5: #{tpu_custom_call.1} parent=1 // pred_fallthru
      _
    // Predicated region
    $region6: #{tpu_custom_call.1} parent=1 // pred_check
      _
    $region7: #{tpu_custom_call.1} parent=1 // pred_check_branch
      %15 = sbr.rel (0) target = $region9
    $region8: #{tpu_custom_call.1} parent=1 // pred_region
      _
    $region9: #{tpu_custom_call.1} parent=1 // pred_fallthru
      _
    // Predicated region
    $region10: #{tpu_custom_call.1} parent=1 // pred_check
      _
    $region11: #{tpu_custom_call.1} parent=1 // pred_check_branch
      %17 = sbr.rel (0) target = $region13
    $region12: #{tpu_custom_call.1} parent=1 // pred_region
      _
    $region13: #{tpu_custom_call.1} parent=1 // pred_fallthru
      _
    %v18 = vld [vmem:[%s0] sm:$0xff]
    %v19 = vld [vmem:[%s2] sm:$0xff]
    %v20 = vld [vmem:[%s2 + $0x8] sm:$0xff]
    %v21 = vld [vmem:[%s2 + $0x10] sm:$0xff]
    %v22 = vld [vmem:[%s2 + $0x18] sm:$0xff]
    %24 = vset.pattern.permute.xlu0 0
    %25 = vperm.xlu0 %24, %v19
    %v26 = vpop.permute.xlu0 %25
    %29 = vset.pattern.permute.xlu0 0
    %30 = vperm.xlu0 %29, %v20
    %v31 = vpop.permute.xlu0 %30
    %34 = vset.pattern.permute.xlu0 0
    %35 = vperm.xlu0 %34, %v21
    %v36 = vpop.permute.xlu0 %35
    %39 = vset.pattern.permute.xlu0 0
    %40 = vperm.xlu0 %39, %v22
    %v41 = vpop.permute.xlu0 %40
    %v43 = vmul.f32 %v18, %v26
    %v44 = vmul.f32 %v18, %v31
    %v45 = vmul.f32 %v18, %v36
    %v46 = vmul.f32 %v18, %v41
    %v47 = vand.u32 2147483647, %v43
    %vm48 = vcmp.le.f32.partialorder %v47, 0.7853982
    %vm49 = vcmp.lt.s32.totalorder %v43, 0
    %v50 = vand.u32 %v43, 2139095040
    %v51 = vshrl.u32 %v50, 23
    %v52 = vsub.s32 %v51, 127
    %v53 = vand.u32 2147483647, %v43
    %v54 = vand.u32 %v53, 8388607
    %v55 = vor.u32 %v54, 8388608
    %v56 = vsub.s32 0, %v55
    %v57 = vadd.s32 %v52, 1
    %vm58 = vcmp.gt.s32.totalorder %v57, 0
    %v59 = vsel %vm58, %v57, 0
    %v60 = vshrl.u32 %v59, 5
    %v61 = vand.u32 %v59, 31
    %v62 = vsub.s32 32, %v61
    %v63 = vshrl.u32 683565275, %v62
    %v64 = vshll.u32 683565275, %v61
    %v65 = vshrl.u32 2475754826, %v62
    %v66 = vor.u32 %v64, %v65
    %v67 = vshll.u32 2475754826, %v61
    %v68 = vshrl.u32 2131351028, %v62
    %v69 = vor.u32 %v67, %v68
    %v70 = vshll.u32 2131351028, %v61
    %v71 = vshrl.u32 2102212464, %v62
    %v72 = vor.u32 %v70, %v71
    %v73 = vshll.u32 2102212464, %v61
    %v74 = vshrl.u32 920167782, %v62
    %v75 = vor.u32 %v73, %v74
    %v76 = vshll.u32 920167782, %v61
    %v77 = vshrl.u32 1326507024, %v62
    %v78 = vor.u32 %v76, %v77
    %vm79 = vcmp.lt.s32.totalorder %v60, 1
    %vm80 = vcmp.lt.s32.totalorder %v60, 2
    %vm81 = vcmp.lt.s32.totalorder %v60, 3
    %vm82 = vcmp.lt.s32.totalorder %v60, 4
    %v83 = vsel %vm79, %v63, %v66
    %v84 = vsel %vm82, %v72, 2102212464
    %v85 = vsel %vm81, %v69, %v84
    %v86 = vsel %vm80, %v83, %v85
    %v87 = vsel %vm79, %v66, %v69
    %v88 = vsel %vm82, %v75, 920167782
    %v89 = vsel %vm81, %v72, %v88
    %v90 = vsel %vm80, %v87, %v89
    %v91 = vsel %vm79, %v69, %v72
    %v92 = vsel %vm82, %v78, 1326507024
    %v93 = vsel %vm81, %v75, %v92
    %v94 = vsel %vm80, %v91, %v93
    %v95 = vshll.u32 %v55, 8
    %v96 = vmul.u32.u64.compose %v95, %v94
    %v97 = vextract.low.u32 %v96
    %v98 = vextract.high.u32 %v96
    %v99 = vmul.u32.u64.compose %v95, %v90
    %v100 = vextract.low.u32 %v99
    %v101 = vextract.high.u32 %v99
    %v102 = vmul.u32 %v95, %v86
    %v103 = vadd.s32 %v98, %v100
    %vm104 = vc.u32 %v98, %v100
    %v105 = vadd.s32 %v101, 1
    %v106 = vsel %vm104, %v105, %v101
    %v107 = vadd.s32 %v102, %v106
    %v108 = vadd.s32 %v107, 536870912
    %v109 = vshrl.u32 %v108, 30
    %v110 = vshll.u32 %v109, 30
    %v111 = vsub.s32 %v107, %v110
    %vm112 = vcmp.lt.s32.totalorder %v111, 0
    %v113 = vsub.s32 0, %v111
    %v114 = vsel %vm112, %v113, %v111
    %v115 = vclz %v114
    %v116 = vsub.s32 %v115, 2
    %vm117 = vcmp.gt.s32.totalorder 0, %v116
    %v118 = vsel %vm117, 0, %v116
    %v119 = vsub.s32 32, %v118
    %v120 = vshll.u32 %v111, %v118
    %v121 = vshrl.u32 %v103, %v119
    %v122 = vor.u32 %v120, %v121
    %v123 = vsub.s32 4294967266, %v118
    %v124 = vadd.s32 %v123, 127
    %v125 = vshll.u32 %v124, 23
    %v126 = vor.u32 4788187, %v125
    %v127 = vand.u32 2147483647, %v126
    %v129 = vcvt.s32.f32 %v122
    %v130 = vmul.f32 %v129, %v127
    %v131 = vxor.u32 %v130, 2147483648
    %v132 = vsel %vm49, %v131, %v130
    %v133 = vsub.s32 4, %v109
    %v134 = vsel %vm49, %v133, %v109
    %v135 = vsel %vm48, %v43, %v132
    %v136 = vsel %vm48, 0, %v134
    %v137 = vcosq.f32.pop %v135
    %v138 = vsinq.f32.pop %v135
    %vm139 = vweird.f32 %v43
    %v140 = vadd.s32 %v136, 3
    %v141 = vand.u32 %v140, 3
    %vm142 = vcmp.lt.s32.totalorder %v141, 2
    %vm143 = vcmp.eq.s32.totalorder %v141, 0
    %v144 = vxor.u32 %v138, 2147483648
    %v145 = vsel %vm143, %v137, %v144
    %vm146 = vcmp.eq.s32.totalorder %v141, 2
    %v147 = vxor.u32 %v137, 2147483648
    %v148 = vsel %vm146, %v147, %v138
    %v149 = vsel %vm142, %v145, %v148
    %v150 = vsel %vm139, nan, %v149
    %v151 = vand.u32 2147483647, %v44
    %vm152 = vcmp.le.f32.partialorder %v151, 0.7853982
    %vm153 = vcmp.lt.s32.totalorder %v44, 0
    %v154 = vand.u32 %v44, 2139095040
    %v155 = vshrl.u32 %v154, 23
    %v156 = vsub.s32 %v155, 127
    %v157 = vand.u32 2147483647, %v44
    %v158 = vand.u32 %v157, 8388607
    %v159 = vor.u32 %v158, 8388608
    %v160 = vsub.s32 0, %v159
    %v161 = vadd.s32 %v156, 1
    %vm162 = vcmp.gt.s32.totalorder %v161, 0
    %v163 = vsel %vm162, %v161, 0
    %v164 = vshrl.u32 %v163, 5
    %v165 = vand.u32 %v163, 31
    %v166 = vsub.s32 32, %v165
    %v167 = vshrl.u32 683565275, %v166
    %v168 = vshll.u32 683565275, %v165
    %v169 = vshrl.u32 2475754826, %v166
    %v170 = vor.u32 %v168, %v169
    %v171 = vshll.u32 2475754826, %v165
    %v172 = vshrl.u32 2131351028, %v166
    %v173 = vor.u32 %v171, %v172
    %v174 = vshll.u32 2131351028, %v165
    %v175 = vshrl.u32 2102212464, %v166
    %v176 = vor.u32 %v174, %v175
    %v177 = vshll.u32 2102212464, %v165
    %v178 = vshrl.u32 920167782, %v166
    %v179 = vor.u32 %v177, %v178
    %v180 = vshll.u32 920167782, %v165
    %v181 = vshrl.u32 1326507024, %v166
    %v182 = vor.u32 %v180, %v181
    %vm183 = vcmp.lt.s32.totalorder %v164, 1
    %vm184 = vcmp.lt.s32.totalorder %v164, 2
    %vm185 = vcmp.lt.s32.totalorder %v164, 3
    %vm186 = vcmp.lt.s32.totalorder %v164, 4
    %v187 = vsel %vm183, %v167, %v170
    %v188 = vsel %vm186, %v176, 2102212464
    %v189 = vsel %vm185, %v173, %v188
    %v190 = vsel %vm184, %v187, %v189
    %v191 = vsel %vm183, %v170, %v173
    %v192 = vsel %vm186, %v179, 920167782
    %v193 = vsel %vm185, %v176, %v192
    %v194 = vsel %vm184, %v191, %v193
    %v195 = vsel %vm183, %v173, %v176
    %v196 = vsel %vm186, %v182, 1326507024
    %v197 = vsel %vm185, %v179, %v196
    %v198 = vsel %vm184, %v195, %v197
    %v199 = vshll.u32 %v159, 8
    %v200 = vmul.u32.u64.compose %v199, %v198
    %v201 = vextract.low.u32 %v200
    %v202 = vextract.high.u32 %v200
    %v203 = vmul.u32.u64.compose %v199, %v194
    %v204 = vextract.low.u32 %v203
    %v205 = vextract.high.u32 %v203
    %v206 = vmul.u32 %v199, %v190
    %v207 = vadd.s32 %v202, %v204
    %vm208 = vc.u32 %v202, %v204
    %v209 = vadd.s32 %v205, 1
    %v210 = vsel %vm208, %v209, %v205
    %v211 = vadd.s32 %v206, %v210
    %v212 = vadd.s32 %v211, 536870912
    %v213 = vshrl.u32 %v212, 30
    %v214 = vshll.u32 %v213, 30
    %v215 = vsub.s32 %v211, %v214
    %vm216 = vcmp.lt.s32.totalorder %v215, 0
    %v217 = vsub.s32 0, %v215
    %v218 = vsel %vm216, %v217, %v215
    %v219 = vclz %v218
    %v220 = vsub.s32 %v219, 2
    %vm221 = vcmp.gt.s32.totalorder 0, %v220
    %v222 = vsel %vm221, 0, %v220
    %v223 = vsub.s32 32, %v222
    %v224 = vshll.u32 %v215, %v222
    %v225 = vshrl.u32 %v207, %v223
    %v226 = vor.u32 %v224, %v225
    %v227 = vsub.s32 4294967266, %v222
    %v228 = vadd.s32 %v227, 127
    %v229 = vshll.u32 %v228, 23
    %v230 = vor.u32 4788187, %v229
    %v231 = vand.u32 2147483647, %v230
    %v233 = vcvt.s32.f32 %v226
    %v234 = vmul.f32 %v233, %v231
    %v235 = vxor.u32 %v234, 2147483648
    %v236 = vsel %vm153, %v235, %v234
    %v237 = vsub.s32 4, %v213
    %v238 = vsel %vm153, %v237, %v213
    %v239 = vsel %vm152, %v44, %v236
    %v240 = vsel %vm152, 0, %v238
    %v241 = vcosq.f32.pop %v239
    %v242 = vsinq.f32.pop %v239
    %vm243 = vweird.f32 %v44
    %v244 = vadd.s32 %v240, 3
    %v245 = vand.u32 %v244, 3
    %vm246 = vcmp.lt.s32.totalorder %v245, 2
    %vm247 = vcmp.eq.s32.totalorder %v245, 0
    %v248 = vxor.u32 %v242, 2147483648
    %v249 = vsel %vm247, %v241, %v248
    %vm250 = vcmp.eq.s32.totalorder %v245, 2
    %v251 = vxor.u32 %v241, 2147483648
    %v252 = vsel %vm250, %v251, %v242
    %v253 = vsel %vm246, %v249, %v252
    %v254 = vsel %vm243, nan, %v253
    %v255 = vand.u32 2147483647, %v45
    %vm256 = vcmp.le.f32.partialorder %v255, 0.7853982
    %vm257 = vcmp.lt.s32.totalorder %v45, 0
    %v258 = vand.u32 %v45, 2139095040
    %v259 = vshrl.u32 %v258, 23
    %v260 = vsub.s32 %v259, 127
    %v261 = vand.u32 2147483647, %v45
    %v262 = vand.u32 %v261, 8388607
    %v263 = vor.u32 %v262, 8388608
    %v264 = vsub.s32 0, %v263
    %v265 = vadd.s32 %v260, 1
    %vm266 = vcmp.gt.s32.totalorder %v265, 0
    %v267 = vsel %vm266, %v265, 0
    %v268 = vshrl.u32 %v267, 5
    %v269 = vand.u32 %v267, 31
    %v270 = vsub.s32 32, %v269
    %v271 = vshrl.u32 683565275, %v270
    %v272 = vshll.u32 683565275, %v269
    %v273 = vshrl.u32 2475754826, %v270
    %v274 = vor.u32 %v272, %v273
    %v275 = vshll.u32 2475754826, %v269
    %v276 = vshrl.u32 2131351028, %v270
    %v277 = vor.u32 %v275, %v276
    %v278 = vshll.u32 2131351028, %v269
    %v279 = vshrl.u32 2102212464, %v270
    %v280 = vor.u32 %v278, %v279
    %v281 = vshll.u32 2102212464, %v269
    %v282 = vshrl.u32 920167782, %v270
    %v283 = vor.u32 %v281, %v282
    %v284 = vshll.u32 920167782, %v269
    %v285 = vshrl.u32 1326507024, %v270
    %v286 = vor.u32 %v284, %v285
    %vm287 = vcmp.lt.s32.totalorder %v268, 1
    %vm288 = vcmp.lt.s32.totalorder %v268, 2
    %vm289 = vcmp.lt.s32.totalorder %v268, 3
    %vm290 = vcmp.lt.s32.totalorder %v268, 4
    %v291 = vsel %vm287, %v271, %v274
    %v292 = vsel %vm290, %v280, 2102212464
    %v293 = vsel %vm289, %v277, %v292
    %v294 = vsel %vm288, %v291, %v293
    %v295 = vsel %vm287, %v274, %v277
    %v296 = vsel %vm290, %v283, 920167782
    %v297 = vsel %vm289, %v280, %v296
    %v298 = vsel %vm288, %v295, %v297
    %v299 = vsel %vm287, %v277, %v280
    %v300 = vsel %vm290, %v286, 1326507024
    %v301 = vsel %vm289, %v283, %v300
    %v302 = vsel %vm288, %v299, %v301
    %v303 = vshll.u32 %v263, 8
    %v304 = vmul.u32.u64.compose %v303, %v302
    %v305 = vextract.low.u32 %v304
    %v306 = vextract.high.u32 %v304
    %v307 = vmul.u32.u64.compose %v303, %v298
    %v308 = vextract.low.u32 %v307
    %v309 = vextract.high.u32 %v307
    %v310 = vmul.u32 %v303, %v294
    %v311 = vadd.s32 %v306, %v308
    %vm312 = vc.u32 %v306, %v308
    %v313 = vadd.s32 %v309, 1
    %v314 = vsel %vm312, %v313, %v309
    %v315 = vadd.s32 %v310, %v314
    %v316 = vadd.s32 %v315, 536870912
    %v317 = vshrl.u32 %v316, 30
    %v318 = vshll.u32 %v317, 30
    %v319 = vsub.s32 %v315, %v318
    %vm320 = vcmp.lt.s32.totalorder %v319, 0
    %v321 = vsub.s32 0, %v319
    %v322 = vsel %vm320, %v321, %v319
    %v323 = vclz %v322
    %v324 = vsub.s32 %v323, 2
    %vm325 = vcmp.gt.s32.totalorder 0, %v324
    %v326 = vsel %vm325, 0, %v324
    %v327 = vsub.s32 32, %v326
    %v328 = vshll.u32 %v319, %v326
    %v329 = vshrl.u32 %v311, %v327
    %v330 = vor.u32 %v328, %v329
    %v331 = vsub.s32 4294967266, %v326
    %v332 = vadd.s32 %v331, 127
    %v333 = vshll.u32 %v332, 23
    %v334 = vor.u32 4788187, %v333
    %v335 = vand.u32 2147483647, %v334
    %v337 = vcvt.s32.f32 %v330
    %v338 = vmul.f32 %v337, %v335
    %v339 = vxor.u32 %v338, 2147483648
    %v340 = vsel %vm257, %v339, %v338
    %v341 = vsub.s32 4, %v317
    %v342 = vsel %vm257, %v341, %v317
    %v343 = vsel %vm256, %v45, %v340
    %v344 = vsel %vm256, 0, %v342
    %v345 = vcosq.f32.pop %v343
    %v346 = vsinq.f32.pop %v343
    %vm347 = vweird.f32 %v45
    %v348 = vadd.s32 %v344, 3
    %v349 = vand.u32 %v348, 3
    %vm350 = vcmp.lt.s32.totalorder %v349, 2
    %vm351 = vcmp.eq.s32.totalorder %v349, 0
    %v352 = vxor.u32 %v346, 2147483648
    %v353 = vsel %vm351, %v345, %v352
    %vm354 = vcmp.eq.s32.totalorder %v349, 2
    %v355 = vxor.u32 %v345, 2147483648
    %v356 = vsel %vm354, %v355, %v346
    %v357 = vsel %vm350, %v353, %v356
    %v358 = vsel %vm347, nan, %v357
    %v359 = vand.u32 2147483647, %v46
    %vm360 = vcmp.le.f32.partialorder %v359, 0.7853982
    %vm361 = vcmp.lt.s32.totalorder %v46, 0
    %v362 = vand.u32 %v46, 2139095040
    %v363 = vshrl.u32 %v362, 23
    %v364 = vsub.s32 %v363, 127
    %v365 = vand.u32 2147483647, %v46
    %v366 = vand.u32 %v365, 8388607
    %v367 = vor.u32 %v366, 8388608
    %v368 = vsub.s32 0, %v367
    %v369 = vadd.s32 %v364, 1
    %vm370 = vcmp.gt.s32.totalorder %v369, 0
    %v371 = vsel %vm370, %v369, 0
    %v372 = vshrl.u32 %v371, 5
    %v373 = vand.u32 %v371, 31
    %v374 = vsub.s32 32, %v373
    %v375 = vshrl.u32 683565275, %v374
    %v376 = vshll.u32 683565275, %v373
    %v377 = vshrl.u32 2475754826, %v374
    %v378 = vor.u32 %v376, %v377
    %v379 = vshll.u32 2475754826, %v373
    %v380 = vshrl.u32 2131351028, %v374
    %v381 = vor.u32 %v379, %v380
    %v382 = vshll.u32 2131351028, %v373
    %v383 = vshrl.u32 2102212464, %v374
    %v384 = vor.u32 %v382, %v383
    %v385 = vshll.u32 2102212464, %v373
    %v386 = vshrl.u32 920167782, %v374
    %v387 = vor.u32 %v385, %v386
    %v388 = vshll.u32 920167782, %v373
    %v389 = vshrl.u32 1326507024, %v374
    %v390 = vor.u32 %v388, %v389
    %vm391 = vcmp.lt.s32.totalorder %v372, 1
    %vm392 = vcmp.lt.s32.totalorder %v372, 2
    %vm393 = vcmp.lt.s32.totalorder %v372, 3
    %vm394 = vcmp.lt.s32.totalorder %v372, 4
    %v395 = vsel %vm391, %v375, %v378
    %v396 = vsel %vm394, %v384, 2102212464
    %v397 = vsel %vm393, %v381, %v396
    %v398 = vsel %vm392, %v395, %v397
    %v399 = vsel %vm391, %v378, %v381
    %v400 = vsel %vm394, %v387, 920167782
    %v401 = vsel %vm393, %v384, %v400
    %v402 = vsel %vm392, %v399, %v401
    %v403 = vsel %vm391, %v381, %v384
    %v404 = vsel %vm394, %v390, 1326507024
    %v405 = vsel %vm393, %v387, %v404
    %v406 = vsel %vm392, %v403, %v405
    %v407 = vshll.u32 %v367, 8
    %v408 = vmul.u32.u64.compose %v407, %v406
    %v409 = vextract.low.u32 %v408
    %v410 = vextract.high.u32 %v408
    %v411 = vmul.u32.u64.compose %v407, %v402
    %v412 = vextract.low.u32 %v411
    %v413 = vextract.high.u32 %v411
    %v414 = vmul.u32 %v407, %v398
    %v415 = vadd.s32 %v410, %v412
    %vm416 = vc.u32 %v410, %v412
    %v417 = vadd.s32 %v413, 1
    %v418 = vsel %vm416, %v417, %v413
    %v419 = vadd.s32 %v414, %v418
    %v420 = vadd.s32 %v419, 536870912
    %v421 = vshrl.u32 %v420, 30
    %v422 = vshll.u32 %v421, 30
    %v423 = vsub.s32 %v419, %v422
    %vm424 = vcmp.lt.s32.totalorder %v423, 0
    %v425 = vsub.s32 0, %v423
    %v426 = vsel %vm424, %v425, %v423
    %v427 = vclz %v426
    %v428 = vsub.s32 %v427, 2
    %vm429 = vcmp.gt.s32.totalorder 0, %v428
    %v430 = vsel %vm429, 0, %v428
    %v431 = vsub.s32 32, %v430
    %v432 = vshll.u32 %v423, %v430
    %v433 = vshrl.u32 %v415, %v431
    %v434 = vor.u32 %v432, %v433
    %v435 = vsub.s32 4294967266, %v430
    %v436 = vadd.s32 %v435, 127
    %v437 = vshll.u32 %v436, 23
    %v438 = vor.u32 4788187, %v437
    %v439 = vand.u32 2147483647, %v438
    %v441 = vcvt.s32.f32 %v434
    %v442 = vmul.f32 %v441, %v439
    %v443 = vxor.u32 %v442, 2147483648
    %v444 = vsel %vm361, %v443, %v442
    %v445 = vsub.s32 4, %v421
    %v446 = vsel %vm361, %v445, %v421
    %v447 = vsel %vm360, %v46, %v444
    %v448 = vsel %vm360, 0, %v446
    %v449 = vcosq.f32.pop %v447
    %v450 = vsinq.f32.pop %v447
    %vm451 = vweird.f32 %v46
    %v452 = vadd.s32 %v448, 3
    %v453 = vand.u32 %v452, 3
    %vm454 = vcmp.lt.s32.totalorder %v453, 2
    %vm455 = vcmp.eq.s32.totalorder %v453, 0
    %v456 = vxor.u32 %v450, 2147483648
    %v457 = vsel %vm455, %v449, %v456
    %vm458 = vcmp.eq.s32.totalorder %v453, 2
    %v459 = vxor.u32 %v449, 2147483648
    %v460 = vsel %vm458, %v459, %v450
    %v461 = vsel %vm454, %v457, %v460
    %v462 = vsel %vm451, nan, %v461
    %v463 = vld [vmem:[%s1] sm:$0xff]
    %vm464 = vcmask 261120
    %v466 = vsel %vm464, %v463, 0
    %468 = vmatprep.subr.mxu0 0.0
    %469 = vmatpush1.msra.mxu0 %v150
    %470 = vmatprep.subr.mxu0 0.0
    %471 = vmatpush1.msra.mxu0 %v254
    %472 = vmatprep.subr.mxu0 0.0
    %473 = vmatpush1.msra.mxu0 %v358
    %474 = vmatprep.subr.mxu0 0.0
    %475 = vmatpush1.msra.mxu0 %v462
    %476 = vmatprep.subr.mxu0 0.0
    %477 = vmatpush1.msra.mxu0 0.0
    %478 = vmatprep.subr.mxu0 0.0
    %479 = vmatpush1.msra.mxu0 0.0
    %480 = vmatprep.subr.mxu0 0.0
    %481 = vmatpush1.msra.mxu0 0.0
    %482 = vmatprep.subr.mxu0 0.0
    %483 = vmatpush1.msra.mxu0 0.0
    %484 = vmatprep.subr.mxu0 0.0
    %485 = vmatpush1.msra.mxu0 0.0
    %486 = vmatprep.subr.mxu0 0.0
    %487 = vmatpush1.msra.mxu0 0.0
    %488 = vmatprep.subr.mxu0 0.0
    %489 = vmatpush1.msra.mxu0 0.0
    %490 = vmatprep.subr.mxu0 0.0
    %491 = vmatpush1.msra.mxu0 0.0
    %492 = vmatprep.subr.mxu0 0.0
    %493 = vmatpush1.msra.mxu0 0.0
    %494 = vmatprep.subr.mxu0 0.0
    %495 = vmatpush1.msra.mxu0 0.0
    %496 = vmatprep.subr.mxu0 0.0
    %497 = vmatpush1.msra.mxu0 0.0
    %498 = vmatprep.subr.mxu0 0.0
    %499 = vmatpush1.msra.mxu0 0.0
    %500 = vmatprep.subr.mxu0 0.0
    %501 = vmatpush1.msra.mxu0 0.0
    %502 = vmatprep.subr.mxu0 0.0
    %503 = vmatpush1.msra.mxu0 0.0
    %504 = vmatprep.subr.mxu0 0.0
    %505 = vmatpush1.msra.mxu0 0.0
    %506 = vmatprep.subr.mxu0 0.0
    %507 = vmatpush1.msra.mxu0 0.0
    %508 = vmatprep.subr.mxu0 0.0
    %509 = vmatpush1.msra.mxu0 0.0
    %510 = vmatprep.subr.mxu0 0.0
    %511 = vmatpush1.msra.mxu0 0.0
    %512 = vmatprep.subr.mxu0 0.0
    %513 = vmatpush1.msra.mxu0 0.0
    %514 = vmatprep.subr.mxu0 0.0
    %515 = vmatpush1.msra.mxu0 0.0
    %516 = vmatprep.subr.mxu0 0.0
    %517 = vmatpush1.msra.mxu0 0.0
    %518 = vmatprep.subr.mxu0 0.0
    %519 = vmatpush1.msra.mxu0 0.0
    %520 = vmatprep.subr.mxu0 0.0
    %521 = vmatpush1.msra.mxu0 0.0
    %522 = vmatprep.subr.mxu0 0.0
    %523 = vmatpush1.msra.mxu0 0.0
    %524 = vmatprep.subr.mxu0 0.0
    %525 = vmatpush1.msra.mxu0 0.0
    %526 = vmatprep.subr.mxu0 0.0
    %527 = vmatpush1.msra.mxu0 0.0
    %528 = vmatprep.subr.mxu0 0.0
    %529 = vmatpush1.msra.mxu0 0.0
    %530 = vmatprep.subr.mxu0 0.0
    %531 = vmatpush1.msra.mxu0 0.0
    %532 = vmatprep.mubr.f32.mxu0 0.0
    %533 = vmatmul.mubr.f32.gmra.mrb[0].mxu0 %v466
    %v534 = vpop.f32.mrb[0].mxu0
    %v535 = vadd.f32 0.0, %v534
    %v536 = vpop.f32.mrb[0].mxu0
    %537 = vdwg.mxu0
    %538 = vst [vmem:[#allocation2] sm:$0xff] %v535
    %v539 = vmul.f32 %v535, %v535
    %v540 = vrot.slane %v539, 4
    %v541 = vadd.f32 %v539, %v540
    %v542 = vrot.slane %v541, 2
    %v543 = vadd.f32 %v541, %v542
    %v544 = vrot.slane %v543, 1
    %v545 = vadd.f32 %v543, %v544
    %546 = vst [vmem:[#allocation4] sm:$0x1] %v545
    // Predicated region
    $region14: #{tpu_custom_call.1} parent=1 // pred_check
      _
    $region15: #{tpu_custom_call.1} parent=1 // pred_check_branch
      %548 = sbr.rel (0) target = $region17
    $region16: #{tpu_custom_call.1} parent=1 // pred_region
      %s550 = ssub.s32 128, 128
      %551 = vsyncadd [#allocation3], %s550
      %s553 = sshll.u32 [#allocation2], 4
      %s554 = int_to_ptr.vmem [resolvable:$true] %s553
      %556 = dma.vmem_to_hbm [thread:$0]  %s554, 128, %s3, [#allocation3]
    $region17: #{tpu_custom_call.1} parent=1 // pred_fallthru
      _
    // Predicated region
    $region18: #{tpu_custom_call.1} parent=1 // pred_check
      _
    $region19: #{tpu_custom_call.1} parent=1 // pred_check_branch
      %558 = sbr.rel (0) target = $region21
    $region20: #{tpu_custom_call.1} parent=1 // pred_region
      %s560 = ssub.s32 16, 16
      %561 = vsyncadd [#allocation5], %s560
      %s563 = sshll.u32 [#allocation4], 4
      %s564 = int_to_ptr.vmem [resolvable:$true] %s563
      %566 = dma.vmem_to_hbm [thread:$0]  %s564, 16, %s4, [#allocation5]
    $region21: #{tpu_custom_call.1} parent=1 // pred_fallthru
      _
    // Predicated region
    $region22: #{tpu_custom_call.1} parent=1 // pred_check
      _
    $region23: #{tpu_custom_call.1} parent=1 // pred_check_branch
      %568 = sbr.rel (0) target = $region25
    $region24: #{tpu_custom_call.1} parent=1 // pred_region
      %569 = dma.done [#allocation3], 128
    $region25: #{tpu_custom_call.1} parent=1 // pred_fallthru
      _
    // Predicated region
    $region26: #{tpu_custom_call.1} parent=1 // pred_check
      _
    $region27: #{tpu_custom_call.1} parent=1 // pred_check_branch
      %571 = sbr.rel (0) target = $region29
    $region28: #{tpu_custom_call.1} parent=1 // pred_region
      %572 = dma.done [#allocation5], 16
    $region29: #{tpu_custom_call.1} parent=1 // pred_fallthru
      _
    %573 = vsyncpa [#allocation3], 1
    %574 = vsyncpa [#allocation5], 1

</llo_original>
